<compile_context>
chip_gen: v7x
topology: tpu7x:2x2x1
jax: 0.10.0
libtpu: 0.0.40
codegen_flags: <defaults>
</compile_context>

<pallas_src>
import functools

import jax
import jax.numpy as jnp
from jax.experimental import pallas as pl
from jax.experimental.pallas import tpu as pltpu


def _round_up(x: int, m: int) -> int:
    return (x + m - 1) // m * m


def _vmem_capacity_bytes() -> int:
    try:
        return int(pltpu.get_tpu_info().vmem_capacity_bytes)
    except Exception:
        return 64 << 20  # conservative fallback (v7x per-TensorCore size)


_VMEM_CAP = _vmem_capacity_bytes()


def _pick_tile_m(M: int, D: int, vmem_cap: int, tile_m) -> int:
    if tile_m is not None:
        return min(_round_up(tile_m, 128), _round_up(M, 128))
    big_vmem = vmem_cap >= (96 << 20)  # v5e / v6e (128 MiB VMEM); v7x has 64 MiB
    base = 1024 if big_vmem else 512
    if D <= 256:
        # Tiny rows: the kernel is per-step-overhead bound, so enlarge the tile.
        base *= 2
    tm = min(base, _round_up(M, 128))
    # On the 64-MiB (2-TensorCore, v7x) parts, try to give both cores a tile when the
    # problem is big enough ("parallel" M axis shards across cores there).
    if (not big_vmem) and tm == _round_up(M, 128) and M > 256:
        tm = _round_up(pl.cdiv(tm, 2), 128)
    return tm


def _mlp_kernel(x_ref, w1_ref, b1_ref, w2_ref, b2_ref, o_ref):
    # x_ref: (TM, D), w1_ref: (D, D), b1_ref: (1, D) f32, w2_ref: (1, D) f32,
    # b2_ref: (1, 1) f32 in SMEM, o_ref: (1, TM).
    # First linear on the MXU with f32 accumulation (no explicit upcast of x).
    h = jnp.dot(x_ref[...], w1_ref[...], preferred_element_type=jnp.float32)
    h = jnp.maximum(h + b1_ref[...], 0.0)
    # Second linear (D -> 1) on the VPU: multiply by the w2 row + lane reduction.
    s = jnp.sum(h * w2_ref[...], axis=-1, keepdims=True) + b2_ref[0, 0]  # (TM, 1) f32
    # Tiny (TM-element) relayout so the store is lane-dense instead of masked.
    o_ref[...] = jnp.transpose(s).astype(o_ref.dtype)                    # (1, TM)


@functools.partial(jax.jit, static_argnames=("tile_m",))
def importance_predictor(x, w1, b1, w2, b2, *, tile_m=None):
    """x: (B, N, D). w1: (D, D), b1: (D,), w2: (D, 1), b2: (1,). Returns (B, N, 1)."""
    B, N, D = x.shape
    M = B * N

    TM = _pick_tile_m(M, D, _VMEM_CAP, tile_m)
    num_tiles = pl.cdiv(M, TM)
    M_pad = num_tiles * TM

    x2d = x.reshape(M, D)
    w1_in = w1
    # Large resident weight: feed the MXU in bf16 (still f32 accumulation) so w1 fits
    # v7x's 64 MiB VMEM and runs at the native bf16 MXU rate.
    if D >= 2048 and x.dtype == jnp.float32 and w1.dtype == jnp.float32:
        x2d = x2d.astype(jnp.bfloat16)
        w1_in = w1.astype(jnp.bfloat16)
    if M_pad != M:
        x2d = jnp.pad(x2d, ((0, M_pad - M), (0, 0)))

    b1_2d = b1.reshape(1, D).astype(jnp.float32)
    w2_row = w2.reshape(1, D).astype(jnp.float32)   # (D, 1) column -> (1, D) row
    b2_2d = b2.reshape(1, 1).astype(jnp.float32)    # SMEM scalar

    x_itemsize = jnp.dtype(x2d.dtype).itemsize
    w1_itemsize = jnp.dtype(w1_in.dtype).itemsize
    d_lanes = _round_up(D, 128)
    d_sub = _round_up(D, 8)
    tm_lanes = _round_up(TM, 128)
    vmem_needed = (
        2 * TM * d_lanes * x_itemsize        # x double buffer
        + d_sub * d_lanes * w1_itemsize      # w1 (single-buffered, resident)
        + 2 * 8 * d_lanes * 4                # b1 + w2 rows (single-buffered, padded)
        + 2 * TM * d_lanes * 4               # f32 h intermediate (MXU out -> relu/reduce)
        + 2 * 8 * tm_lanes * x_itemsize      # (1, TM) out double buffer (sublane-padded)
    )
    # Leave ~25% of physical VMEM as headroom for Mosaic scratch / surrounding fusions.
    vmem_limit = int(min(max(vmem_needed + (4 << 20), 32 << 20), (_VMEM_CAP * 3) // 4))

    cost = pl.CostEstimate(
        flops=2 * M_pad * D * D + 3 * M_pad * D,
        transcendentals=0,
        bytes_accessed=(M_pad * D * x_itemsize
                        + D * D * w1_itemsize
                        + 2 * D * 4
                        + M_pad * jnp.dtype(x.dtype).itemsize),
    )

    out_row = pl.pallas_call(
        _mlp_kernel,
        out_shape=jax.ShapeDtypeStruct((1, M_pad), x.dtype),
        grid_spec=pltpu.PrefetchScalarGridSpec(
            num_scalar_prefetch=0,
            grid=(num_tiles,),
            in_specs=[
                # x tiles stream through VMEM (double-buffered).
                pl.BlockSpec((TM, D), lambda i: (i, 0)),
                # Grid-invariant operands: DMA'd once, single-buffered.
                pl.BlockSpec((D, D), lambda i: (0, 0), pipeline_mode=pl.Buffered(1)),
                pl.BlockSpec((1, D), lambda i: (0, 0), pipeline_mode=pl.Buffered(1)),
                pl.BlockSpec((1, D), lambda i: (0, 0), pipeline_mode=pl.Buffered(1)),
                # b2 as an SMEM scalar (no lane-padded VMEM tile / DMA).
                pl.BlockSpec(memory_space=pltpu.MemorySpace.SMEM),
            ],
            out_specs=pl.BlockSpec((1, TM), lambda i: (0, i)),  # lane-dense output
        ),
        compiler_params=pltpu.CompilerParams(
            dimension_semantics=("parallel",),  # independent M tiles (2-TC shard on v7x)
            vmem_limit_bytes=vmem_limit,
        ),
        cost_estimate=cost,
    )(x2d, w1_in, b1_2d, w2_row, b2_2d)

    return out_row[0, :M].reshape(B, N, 1)


def _reference(x, w1, b1, w2, b2):
    h = jnp.maximum(jnp.einsum("bnd,de->bne", x, w1) + b1, 0.0)
    return jnp.einsum("bnd,de->bne", h, w2) + b2


if __name__ == "__main__":
    # Small shapes consistent with the module: tokens of width `dim`.
    B, N, D = 2, 8, 32

    key = jax.random.PRNGKey(0)
    kx, kw1, kb1, kw2, kb2 = jax.random.split(key, 5)

    x = jax.random.normal(kx, (B, N, D), dtype=jnp.float32)
    # Synthetic params matching Linear(dim,dim) / Linear(dim,1) shapes (used as x @ w).
    w1 = jax.random.normal(kw1, (D, D), dtype=jnp.float32) * 0.1
    b1 = jax.random.normal(kb1, (D,), dtype=jnp.float32) * 0.1
    w2 = jax.random.normal(kw2, (D, 1), dtype=jnp.float32) * 0.1
    b2 = jax.random.normal(kb2, (1,), dtype=jnp.float32) * 0.1

    out = importance_predictor(x, w1, b1, w2, b2)
    out = jax.block_until_ready(out)

    ref = _reference(x, w1, b1, w2, b2)
    assert out.shape == (B, N, 1), out.shape
    assert jnp.allclose(out, ref, atol=1e-5, rtol=1e-5), "mismatch vs reference"

    print("KERNEL_OK")
</pallas_src>

<mosaic_0001>
module attributes {stable_mosaic.version = 11 : i64} {
  func.func @_mlp_kernel(%arg0: i32, %arg1: memref<128x32xf32, #tpu.memory_space<vmem>>, %arg2: memref<32x32xf32, #tpu.memory_space<vmem>>, %arg3: memref<1x32xf32, #tpu.memory_space<vmem>>, %arg4: memref<1x32xf32, #tpu.memory_space<vmem>>, %arg5: memref<1x1xf32, #tpu.memory_space<smem>>, %arg6: memref<1x128xf32, #tpu.memory_space<vmem>>) attributes {dimension_semantics = [#tpu.dimension_semantics<parallel>], iteration_bounds = array<i64: 1>, scalar_prefetch = 0 : i64, scratch_operands = 0 : i64, tpu.core_type = #tpu.core_type<tc>, window_params = [{transform_indices = @transform_0, window_bounds = array<i64: 128, 32>}, {pipeline_mode = #tpu.pipeline_mode<synchronous>, transform_indices = @transform_1, window_bounds = array<i64: 32, 32>}, {pipeline_mode = #tpu.pipeline_mode<synchronous>, transform_indices = @transform_2, window_bounds = array<i64: 1, 32>}, {pipeline_mode = #tpu.pipeline_mode<synchronous>, transform_indices = @transform_3, window_bounds = array<i64: 1, 32>}, {transform_indices = @transform_4, window_bounds = array<i64: 1, 1>}, {transform_indices = @transform_5, window_bounds = array<i64: 1, 128>}]} {
    %c0 = arith.constant 0 : index
    %c0_0 = arith.constant 0 : index
    %0 = vector.load %arg1[%c0, %c0_0] : memref<128x32xf32, #tpu.memory_space<vmem>>, vector<128x32xf32>
    %c0_1 = arith.constant 0 : index
    %c0_2 = arith.constant 0 : index
    %1 = vector.load %arg2[%c0_1, %c0_2] : memref<32x32xf32, #tpu.memory_space<vmem>>, vector<32x32xf32>
    %cst = arith.constant dense<0.000000e+00> : vector<128x32xf32>
    %2 = tpu.matmul %0, %1, %cst {dimension_numbers = #tpu.dot_dimension_numbers<[1], [0], [0], [1], [0, 0, 1, 1], [], []>} : vector<128x32xf32>, vector<32x32xf32>, vector<128x32xf32> -> vector<128x32xf32>
    %c0_3 = arith.constant 0 : index
    %c0_4 = arith.constant 0 : index
    %3 = vector.load %arg3[%c0_3, %c0_4] : memref<1x32xf32, #tpu.memory_space<vmem>>, vector<1x32xf32>
    %4 = vector.broadcast %3 : vector<1x32xf32> to vector<128x32xf32>
    %5 = arith.addf %2, %4 : vector<128x32xf32>
    %cst_5 = arith.constant 0.000000e+00 : f32
    %6 = vector.broadcast %cst_5 : f32 to vector<128x32xf32>
    %7 = arith.maximumf %5, %6 : vector<128x32xf32>
    %c0_6 = arith.constant 0 : index
    %c0_7 = arith.constant 0 : index
    %8 = vector.load %arg4[%c0_6, %c0_7] : memref<1x32xf32, #tpu.memory_space<vmem>>, vector<1x32xf32>
    %9 = vector.broadcast %8 : vector<1x32xf32> to vector<128x32xf32>
    %10 = arith.mulf %7, %9 : vector<128x32xf32>
    %cst_8 = arith.constant dense<0.000000e+00> : vector<128xf32>
    %11 = vector.multi_reduction <add>, %10, %cst_8 [1] : vector<128x32xf32> to vector<128xf32>
    %12 = vector.shape_cast %11 : vector<128xf32> to vector<128x1xf32>
    %c0_9 = arith.constant 0 : index
    %c0_10 = arith.constant 0 : index
    %13 = memref.load %arg5[%c0_9, %c0_10] : memref<1x1xf32, #tpu.memory_space<smem>>
    %14 = vector.broadcast %13 : f32 to vector<128x1xf32>
    %15 = arith.addf %12, %14 : vector<128x1xf32>
    %16 = tpu.transpose %15, [1, 0] : vector<128x1xf32> -> vector<1x128xf32>
    %c0_11 = arith.constant 0 : index
    %c0_12 = arith.constant 0 : index
    %17 = vector.load %arg6[%c0_11, %c0_12] : memref<1x128xf32, #tpu.memory_space<vmem>>, vector<1x128xf32>
    tpu.vector_store %arg6[%c0_11, %c0_12], %16 {strides = array<i32>} : memref<1x128xf32, #tpu.memory_space<vmem>>, vector<1x128xf32>,
    return
  }
  func.func @transform_0(%arg0: i32) -> (i32, i32) {
    %c0_i32 = arith.constant 0 : i32
    %c0_i32_0 = arith.constant 0 : i32
    return %arg0, %c0_i32 : i32, i32
  }
  func.func @transform_1(%arg0: i32) -> (i32, i32) {
    %c0_i32 = arith.constant 0 : i32
    %c0_i32_0 = arith.constant 0 : i32
    %c0_i32_1 = arith.constant 0 : i32
    return %c0_i32, %c0_i32_0 : i32, i32
  }
  func.func @transform_2(%arg0: i32) -> (i32, i32) {
    %c0_i32 = arith.constant 0 : i32
    %c0_i32_0 = arith.constant 0 : i32
    %c0_i32_1 = arith.constant 0 : i32
    return %c0_i32, %c0_i32_0 : i32, i32
  }
  func.func @transform_3(%arg0: i32) -> (i32, i32) {
    %c0_i32 = arith.constant 0 : i32
    %c0_i32_0 = arith.constant 0 : i32
    %c0_i32_1 = arith.constant 0 : i32
    return %c0_i32, %c0_i32_0 : i32, i32
  }
  func.func @transform_4(%arg0: i32) -> (i32, i32) {
    %c0_i32 = arith.constant 0 : i32
    %c0_i32_0 = arith.constant 0 : i32
    %c0_i32_1 = arith.constant 0 : i32
    return %c0_i32, %c0_i32_0 : i32, i32
  }
  func.func @transform_5(%arg0: i32) -> (i32, i32) {
    %c0_i32 = arith.constant 0 : i32
    %c0_i32_0 = arith.constant 0 : i32
    return %c0_i32, %arg0 : i32, i32
  }
}

</mosaic_0001>

<llo_original>
// kernel: squeeze.1
$region0: #{squeeze.1}
  %s0 = inlined_call_operand.vmem [shape: f32[16], index: 0, kind: input, shape index: {}]
  %s1 = inlined_call_operand.hbm [shape: f32[2,8,1], index: 1, kind: output, shape index: {}]
  $region1: #{squeeze.1} parent=0
    #allocation0 [shape = 'u8[1024]{0}', space=vmem, size = 0x400, scoped, tag = 'operand span for operand 1']
    #allocation1 [shape = 's32[1]{0}', space=sflag, size = 0x4, scoped, tag = 'scoped memory for squeeze.1']
    #allocation2 [shape = 'u8[4096]{0}', space=vmem, size = 0x1000, scoped, tag = 'scoped mem for output reshape']
    #allocation3 [shape = 'u8[4096]{0}', space=vmem, size = 0x1000, scoped, tag = 'scoped mem for input reshape']
    %2 = vsyncpa [#allocation1], 0
    %s4 = sshllo.u32 0, 1
    %v5 = vld [vmem:[%s0] sm:%s4]
    %6 = vst [vmem:[#allocation3] sm:%s4] %v5
    %v7 = vld [vmem:[#allocation3] sm:$0x1]
    %vm8 = vcmask 64512
    %9 = vst.msk [vmem:[#allocation2] sm:$0x1] %vm8, %v7
    %v10 = vld [vmem:[#allocation3] sm:$0x1]
    %11 = vrot.lane.b32.xlu0 %v10, 120
    %v12 = vpop.permute.xlu0 %11
    %vm13 = vcmask 64512
    %s14 = scalar_lea.vmem [#allocation2], 1
    %15 = vst.msk [vmem:[%s14] sm:$0x1] %vm13, %v12
    %s17 = sshllo.u32 0, 2
    %v19 = vld [vmem:[#allocation2] sm:%s17]
    %s20 = sshllo.u32 0, 2
    %21 = vst [vmem:[#allocation0] sm:%s20] %v19
    %s23 = ssub.s32 32, 32
    %24 = vsyncadd [#allocation1], %s23
    %s26 = sshll.u32 [#allocation0], 4
    %s27 = int_to_ptr.vmem [resolvable:$true] %s26
    %29 = dma.vmem_to_hbm [thread:$0]  %s27, 32, %s1, [#allocation1]
    %30 = dma.done [#allocation1], 32
    %31 = vsyncpa [#allocation1], 1

// kernel: importance_predictor.1
$region0: #{importance_predictor.1}
  #allocation0 [shape = 'u32[]', space=smem, size = 0x4, offset = 0x4, fixed_abs, tag = 'smem constant byte address 0x4 - core index']
  #allocation1 [shape = 'u32[144,128]{1,0:T(1,128)}', space=vmem, size = 0x12000, scoped, tag = 'internal scratch']
  #allocation2 [shape = 'f32[1,1]{1,0:T(1,128)S(6)}', space=smem, size = 0x200, scoped, tag = 'scoped memory for importance_predictor.1']
  %s0 = inlined_call_operand.vmem [shape: f32[128,32], index: 0, kind: input, shape index: {}]
  %s1 = inlined_call_operand.vmem [shape: f32[32,32], index: 1, kind: input, shape index: {}]
  %s2 = inlined_call_operand.vmem [shape: f32[1,32], index: 2, kind: input, shape index: {}]
  %s3 = inlined_call_operand.vmem [shape: f32[1,32], index: 3, kind: input, shape index: {}]
  %s4 = inlined_call_operand.<no memory space> [shape: f32[1,1], index: 4, kind: input, shape index: {}]
  %s5 = inlined_call_operand.vmem [shape: f32[1,128], index: 5, kind: output, shape index: {}]
  %s6 = sld [smem:[#allocation0]]
  $region30: #{importance_predictor.1} parent=0
    _
  %s8 = ssub.s32 1, %s6
  %s9 = scalar_select 0, %s8, %s6
  %10 = sst [smem:[#allocation2]] %s4
  // Predicated region
  $region2: #{importance_predictor.1} parent=0 // pred_check
    _
  $region3: #{importance_predictor.1} parent=0 // pred_check_branch
    %12 = sbr.rel (0) target = $region5
  $region4: #{importance_predictor.1} parent=0 // pred_region
    _
  $region5: #{importance_predictor.1} parent=0 // pred_fallthru
    _
  // Predicated region
  $region6: #{importance_predictor.1} parent=0 // pred_check
    _
  $region7: #{importance_predictor.1} parent=0 // pred_check_branch
    %14 = sbr.rel (0) target = $region9
  $region8: #{importance_predictor.1} parent=0 // pred_region
    _
  $region9: #{importance_predictor.1} parent=0 // pred_fallthru
    _
  // Predicated region
  $region10: #{importance_predictor.1} parent=0 // pred_check
    _
  $region11: #{importance_predictor.1} parent=0 // pred_check_branch
    %16 = sbr.rel (0) target = $region13
  $region12: #{importance_predictor.1} parent=0 // pred_region
    _
  $region13: #{importance_predictor.1} parent=0 // pred_fallthru
    _
  // Predicated region
  $region14: #{importance_predictor.1} parent=0 // pred_check
    _
  $region15: #{importance_predictor.1} parent=0 // pred_check_branch
    %18 = sbr.rel (0) target = $region17
  $region16: #{importance_predictor.1} parent=0 // pred_region
    _
  $region17: #{importance_predictor.1} parent=0 // pred_fallthru
    _
  // Predicated region
  $region18: #{importance_predictor.1} parent=0 // pred_check
    _
  $region19: #{importance_predictor.1} parent=0 // pred_check_branch
    %20 = sbr.rel (0) target = $region21
  $region20: #{importance_predictor.1} parent=0 // pred_region
    _
  $region21: #{importance_predictor.1} parent=0 // pred_fallthru
    _
  %v21 = vld [vmem:[%s0] sm:$0xff]
  %v22 = vld [vmem:[%s0 + $0x8] sm:$0xff]
  %v23 = vld [vmem:[%s0 + $0x10] sm:$0xff]
  %v24 = vld [vmem:[%s0 + $0x18] sm:$0xff]
  %v25 = vld [vmem:[%s0 + $0x20] sm:$0xff]
  %v26 = vld [vmem:[%s0 + $0x28] sm:$0xff]
  %v27 = vld [vmem:[%s0 + $0x30] sm:$0xff]
  %v28 = vld [vmem:[%s0 + $0x38] sm:$0xff]
  %v29 = vld [vmem:[%s0 + $0x40] sm:$0xff]
  %v30 = vld [vmem:[%s0 + $0x48] sm:$0xff]
  %v31 = vld [vmem:[%s0 + $0x50] sm:$0xff]
  %v32 = vld [vmem:[%s0 + $0x58] sm:$0xff]
  %v33 = vld [vmem:[%s0 + $0x60] sm:$0xff]
  %v34 = vld [vmem:[%s0 + $0x68] sm:$0xff]
  %v35 = vld [vmem:[%s0 + $0x70] sm:$0xff]
  %v36 = vld [vmem:[%s0 + $0x78] sm:$0xff]
  %v37 = vld [vmem:[%s1] sm:$0xff]
  %v38 = vld [vmem:[%s1 + $0x8] sm:$0xff]
  %v39 = vld [vmem:[%s1 + $0x10] sm:$0xff]
  %v40 = vld [vmem:[%s1 + $0x18] sm:$0xff]
  %v41 = vld [vmem:[%s2] sm:$0x1]
  %v43 = vlaneseq
  %v44 = vshrl.u32 %v43, 7
  %v45 = vsub.s32 0, %v44
  %v46 = vrot.slane %v41, %v45
  %vm48 = vcmask 261120
  %v50 = vsel %vm48, %v21, 0
  %v53 = vsel %vm48, %v22, 0
  %v56 = vsel %vm48, %v23, 0
  %v59 = vsel %vm48, %v24, 0
  %v62 = vsel %vm48, %v25, 0
  %v65 = vsel %vm48, %v26, 0
  %v68 = vsel %vm48, %v27, 0
  %v71 = vsel %vm48, %v28, 0
  %v74 = vsel %vm48, %v29, 0
  %v77 = vsel %vm48, %v30, 0
  %v80 = vsel %vm48, %v31, 0
  %v83 = vsel %vm48, %v32, 0
  %v86 = vsel %vm48, %v33, 0
  %v89 = vsel %vm48, %v34, 0
  %v92 = vsel %vm48, %v35, 0
  %v95 = vsel %vm48, %v36, 0
  %97 = vmatprep.subr.mxu0 0.0
  %98 = vmatpush1.msra.mxu0 %v37
  %99 = vmatprep.subr.mxu0 0.0
  %100 = vmatpush1.msra.mxu0 %v38
  %101 = vmatprep.subr.mxu0 0.0
  %102 = vmatpush1.msra.mxu0 %v39
  %103 = vmatprep.subr.mxu0 0.0
  %104 = vmatpush1.msra.mxu0 %v40
  %105 = vmatprep.subr.mxu0 0.0
  %106 = vmatpush1.msra.mxu0 0.0
  %107 = vmatprep.subr.mxu0 0.0
  %108 = vmatpush1.msra.mxu0 0.0
  %109 = vmatprep.subr.mxu0 0.0
  %110 = vmatpush1.msra.mxu0 0.0
  %111 = vmatprep.subr.mxu0 0.0
  %112 = vmatpush1.msra.mxu0 0.0
  %113 = vmatprep.subr.mxu0 0.0
  %114 = vmatpush1.msra.mxu0 0.0
  %115 = vmatprep.subr.mxu0 0.0
  %116 = vmatpush1.msra.mxu0 0.0
  %117 = vmatprep.subr.mxu0 0.0
  %118 = vmatpush1.msra.mxu0 0.0
  %119 = vmatprep.subr.mxu0 0.0
  %120 = vmatpush1.msra.mxu0 0.0
  %121 = vmatprep.subr.mxu0 0.0
  %122 = vmatpush1.msra.mxu0 0.0
  %123 = vmatprep.subr.mxu0 0.0
  %124 = vmatpush1.msra.mxu0 0.0
  %125 = vmatprep.subr.mxu0 0.0
  %126 = vmatpush1.msra.mxu0 0.0
  %127 = vmatprep.subr.mxu0 0.0
  %128 = vmatpush1.msra.mxu0 0.0
  %129 = vmatprep.subr.mxu0 0.0
  %130 = vmatpush1.msra.mxu0 0.0
  %131 = vmatprep.subr.mxu0 0.0
  %132 = vmatpush1.msra.mxu0 0.0
  %133 = vmatprep.subr.mxu0 0.0
  %134 = vmatpush1.msra.mxu0 0.0
  %135 = vmatprep.subr.mxu0 0.0
  %136 = vmatpush1.msra.mxu0 0.0
  %137 = vmatprep.subr.mxu0 0.0
  %138 = vmatpush1.msra.mxu0 0.0
  %139 = vmatprep.subr.mxu0 0.0
  %140 = vmatpush1.msra.mxu0 0.0
  %141 = vmatprep.subr.mxu0 0.0
  %142 = vmatpush1.msra.mxu0 0.0
  %143 = vmatprep.subr.mxu0 0.0
  %144 = vmatpush1.msra.mxu0 0.0
  %145 = vmatprep.subr.mxu0 0.0
  %146 = vmatpush1.msra.mxu0 0.0
  %147 = vmatprep.subr.mxu0 0.0
  %148 = vmatpush1.msra.mxu0 0.0
  %149 = vmatprep.subr.mxu0 0.0
  %150 = vmatpush1.msra.mxu0 0.0
  %151 = vmatprep.subr.mxu0 0.0
  %152 = vmatpush1.msra.mxu0 0.0
  %153 = vmatprep.subr.mxu0 0.0
  %154 = vmatpush1.msra.mxu0 0.0
  %155 = vmatprep.subr.mxu0 0.0
  %156 = vmatpush1.msra.mxu0 0.0
  %157 = vmatprep.subr.mxu0 0.0
  %158 = vmatpush1.msra.mxu0 0.0
  %159 = vmatprep.subr.mxu0 0.0
  %160 = vmatpush1.msra.mxu0 0.0
  %161 = vmatprep.mubr.f32.mxu0 0.0
  %162 = vmatmul.mubr.f32.gmra.mrb[0].mxu0 %v50
  %v163 = vpop.f32.mrb[0].mxu0
  %v164 = vadd.f32 %v46, %v163
  %v165 = vpop.f32.mrb[0].mxu0
  %166 = vmatprep.mubr.f32.mxu0 0.0
  %167 = vmatmul.mubr.f32.gmra.mrb[0].mxu0 %v53
  %v168 = vpop.f32.mrb[0].mxu0
  %v169 = vadd.f32 %v46, %v168
  %v170 = vpop.f32.mrb[0].mxu0
  %171 = vmatprep.mubr.f32.mxu0 0.0
  %172 = vmatmul.mubr.f32.gmra.mrb[0].mxu0 %v56
  %v173 = vpop.f32.mrb[0].mxu0
  %v174 = vadd.f32 %v46, %v173
  %v175 = vpop.f32.mrb[0].mxu0
  %176 = vmatprep.mubr.f32.mxu0 0.0
  %177 = vmatmul.mubr.f32.gmra.mrb[0].mxu0 %v59
  %v178 = vpop.f32.mrb[0].mxu0
  %v179 = vadd.f32 %v46, %v178
  %v180 = vpop.f32.mrb[0].mxu0
  %181 = vmatprep.mubr.f32.mxu0 0.0
  %182 = vmatmul.mubr.f32.gmra.mrb[0].mxu0 %v62
  %v183 = vpop.f32.mrb[0].mxu0
  %v184 = vadd.f32 %v46, %v183
  %v185 = vpop.f32.mrb[0].mxu0
  %186 = vmatprep.mubr.f32.mxu0 0.0
  %187 = vmatmul.mubr.f32.gmra.mrb[0].mxu0 %v65
  %v188 = vpop.f32.mrb[0].mxu0
  %v189 = vadd.f32 %v46, %v188
  %v190 = vpop.f32.mrb[0].mxu0
  %191 = vmatprep.mubr.f32.mxu0 0.0
  %192 = vmatmul.mubr.f32.gmra.mrb[0].mxu0 %v68
  %v193 = vpop.f32.mrb[0].mxu0
  %v194 = vadd.f32 %v46, %v193
  %v195 = vpop.f32.mrb[0].mxu0
  %196 = vmatprep.mubr.f32.mxu0 0.0
  %197 = vmatmul.mubr.f32.gmra.mrb[0].mxu0 %v71
  %v198 = vpop.f32.mrb[0].mxu0
  %v199 = vadd.f32 %v46, %v198
  %v200 = vpop.f32.mrb[0].mxu0
  %201 = vmatprep.mubr.f32.mxu0 0.0
  %202 = vmatmul.mubr.f32.gmra.mrb[0].mxu0 %v74
  %v203 = vpop.f32.mrb[0].mxu0
  %v204 = vadd.f32 %v46, %v203
  %v205 = vpop.f32.mrb[0].mxu0
  %206 = vmatprep.mubr.f32.mxu0 0.0
  %207 = vmatmul.mubr.f32.gmra.mrb[0].mxu0 %v77
  %v208 = vpop.f32.mrb[0].mxu0
  %v209 = vadd.f32 %v46, %v208
  %v210 = vpop.f32.mrb[0].mxu0
  %211 = vmatprep.mubr.f32.mxu0 0.0
  %212 = vmatmul.mubr.f32.gmra.mrb[0].mxu0 %v80
  %v213 = vpop.f32.mrb[0].mxu0
  %v214 = vadd.f32 %v46, %v213
  %v215 = vpop.f32.mrb[0].mxu0
  %216 = vmatprep.mubr.f32.mxu0 0.0
  %217 = vmatmul.mubr.f32.gmra.mrb[0].mxu0 %v83
  %v218 = vpop.f32.mrb[0].mxu0
  %v219 = vadd.f32 %v46, %v218
  %v220 = vpop.f32.mrb[0].mxu0
  %221 = vmatprep.mubr.f32.mxu0 0.0
  %222 = vmatmul.mubr.f32.gmra.mrb[0].mxu0 %v86
  %v223 = vpop.f32.mrb[0].mxu0
  %v224 = vadd.f32 %v46, %v223
  %v225 = vpop.f32.mrb[0].mxu0
  %226 = vmatprep.mubr.f32.mxu0 0.0
  %227 = vmatmul.mubr.f32.gmra.mrb[0].mxu0 %v89
  %v228 = vpop.f32.mrb[0].mxu0
  %v229 = vadd.f32 %v46, %v228
  %v230 = vpop.f32.mrb[0].mxu0
  %231 = vmatprep.mubr.f32.mxu0 0.0
  %232 = vmatmul.mubr.f32.gmra.mrb[0].mxu0 %v92
  %v233 = vpop.f32.mrb[0].mxu0
  %v234 = vadd.f32 %v46, %v233
  %v235 = vpop.f32.mrb[0].mxu0
  %236 = vmatprep.mubr.f32.mxu0 0.0
  %237 = vmatmul.mubr.f32.gmra.mrb[0].mxu0 %v95
  %v238 = vpop.f32.mrb[0].mxu0
  %v239 = vadd.f32 %v46, %v238
  %v240 = vpop.f32.mrb[0].mxu0
  %241 = vdwg.mxu0
  %v242 = vmax.f32 %v164, 0.0
  %v243 = vmax.f32 %v169, 0.0
  %v244 = vmax.f32 %v174, 0.0
  %v245 = vmax.f32 %v179, 0.0
  %v246 = vmax.f32 %v184, 0.0
  %v247 = vmax.f32 %v189, 0.0
  %v248 = vmax.f32 %v194, 0.0
  %v249 = vmax.f32 %v199, 0.0
  %v250 = vmax.f32 %v204, 0.0
  %v251 = vmax.f32 %v209, 0.0
  %v252 = vmax.f32 %v214, 0.0
  %v253 = vmax.f32 %v219, 0.0
  %v254 = vmax.f32 %v224, 0.0
  %v255 = vmax.f32 %v229, 0.0
  %v256 = vmax.f32 %v234, 0.0
  %v257 = vmax.f32 %v239, 0.0
  %v258 = vld [vmem:[%s3] sm:$0x1]
  %v260 = vlaneseq
  %v261 = vshrl.u32 %v260, 7
  %v262 = vsub.s32 0, %v261
  %v263 = vrot.slane %v258, %v262
  %v265 = vmul.f32 %v242, %v263
  %v266 = vmul.f32 %v243, %v263
  %v267 = vmul.f32 %v244, %v263
  %v268 = vmul.f32 %v245, %v263
  %v269 = vmul.f32 %v246, %v263
  %v270 = vmul.f32 %v247, %v263
  %v271 = vmul.f32 %v248, %v263
  %v272 = vmul.f32 %v249, %v263
  %v273 = vmul.f32 %v250, %v263
  %v274 = vmul.f32 %v251, %v263
  %v275 = vmul.f32 %v252, %v263
  %v276 = vmul.f32 %v253, %v263
  %v277 = vmul.f32 %v254, %v263
  %v278 = vmul.f32 %v255, %v263
  %v279 = vmul.f32 %v256, %v263
  %v280 = vmul.f32 %v257, %v263
  %v281 = vsel %vm48, %v265, 0.0
  %282 = vadd.xlane.f32.xlu0 %v281
  %v283 = vpop.xlane.xlu0 %282
  %v284 = vsel %vm48, %v266, 0.0
  %285 = vadd.xlane.f32.xlu0 %v284
  %v286 = vpop.xlane.xlu0 %285
  %v287 = vsel %vm48, %v267, 0.0
  %288 = vadd.xlane.f32.xlu0 %v287
  %v289 = vpop.xlane.xlu0 %288
  %v290 = vsel %vm48, %v268, 0.0
  %291 = vadd.xlane.f32.xlu0 %v290
  %v292 = vpop.xlane.xlu0 %291
  %v293 = vsel %vm48, %v269, 0.0
  %294 = vadd.xlane.f32.xlu0 %v293
  %v295 = vpop.xlane.xlu0 %294
  %v296 = vsel %vm48, %v270, 0.0
  %297 = vadd.xlane.f32.xlu0 %v296
  %v298 = vpop.xlane.xlu0 %297
  %v299 = vsel %vm48, %v271, 0.0
  %300 = vadd.xlane.f32.xlu0 %v299
  %v301 = vpop.xlane.xlu0 %300
  %v302 = vsel %vm48, %v272, 0.0
  %303 = vadd.xlane.f32.xlu0 %v302
  %v304 = vpop.xlane.xlu0 %303
  %v305 = vsel %vm48, %v273, 0.0
  %306 = vadd.xlane.f32.xlu0 %v305
  %v307 = vpop.xlane.xlu0 %306
  %v308 = vsel %vm48, %v274, 0.0
  %309 = vadd.xlane.f32.xlu0 %v308
  %v310 = vpop.xlane.xlu0 %309
  %v311 = vsel %vm48, %v275, 0.0
  %312 = vadd.xlane.f32.xlu0 %v311
  %v313 = vpop.xlane.xlu0 %312
  %v314 = vsel %vm48, %v276, 0.0
  %315 = vadd.xlane.f32.xlu0 %v314
  %v316 = vpop.xlane.xlu0 %315
  %v317 = vsel %vm48, %v277, 0.0
  %318 = vadd.xlane.f32.xlu0 %v317
  %v319 = vpop.xlane.xlu0 %318
  %v320 = vsel %vm48, %v278, 0.0
  %321 = vadd.xlane.f32.xlu0 %v320
  %v322 = vpop.xlane.xlu0 %321
  %v323 = vsel %vm48, %v279, 0.0
  %324 = vadd.xlane.f32.xlu0 %v323
  %v325 = vpop.xlane.xlu0 %324
  %v326 = vsel %vm48, %v280, 0.0
  %327 = vadd.xlane.f32.xlu0 %v326
  %v328 = vpop.xlane.xlu0 %327
  %s329 = sld [smem:[#allocation2]]
  %v330 = vstv %s329
  %v331 = vadd.f32 %v283, %v330
  %v332 = vadd.f32 %v286, %v330
  %v333 = vadd.f32 %v289, %v330
  %v334 = vadd.f32 %v292, %v330
  %v335 = vadd.f32 %v295, %v330
  %v336 = vadd.f32 %v298, %v330
  %v337 = vadd.f32 %v301, %v330
  %v338 = vadd.f32 %v304, %v330
  %v339 = vadd.f32 %v307, %v330
  %v340 = vadd.f32 %v310, %v330
  %v341 = vadd.f32 %v313, %v330
  %v342 = vadd.f32 %v316, %v330
  %v343 = vadd.f32 %v319, %v330
  %v344 = vadd.f32 %v322, %v330
  %v345 = vadd.f32 %v325, %v330
  %v346 = vadd.f32 %v328, %v330
  %347 = vxpose.xlu0.b32.start [1/16] %v331, 128
  %348 = vxpose.xlu0.b32.cont [2/16] %v332, 128
  %349 = vxpose.xlu0.b32.cont [3/16] %v333, 128
  %350 = vxpose.xlu0.b32.cont [4/16] %v334, 128
  %351 = vxpose.xlu0.b32.cont [5/16] %v335, 128
  %352 = vxpose.xlu0.b32.cont [6/16] %v336, 128
  %353 = vxpose.xlu0.b32.cont [7/16] %v337, 128
  %354 = vxpose.xlu0.b32.cont [8/16] %v338, 128
  %355 = vxpose.xlu0.b32.cont [9/16] %v339, 128
  %356 = vxpose.xlu0.b32.cont [10/16] %v340, 128
  %357 = vxpose.xlu0.b32.cont [11/16] %v341, 128
  %358 = vxpose.xlu0.b32.cont [12/16] %v342, 128
  %359 = vxpose.xlu0.b32.cont [13/16] %v343, 128
  %360 = vxpose.xlu0.b32.cont [14/16] %v344, 128
  %361 = vxpose.xlu0.b32.cont [15/16] %v345, 128
  %362 = vxpose.xlu0.b32.end [16/16] %v346, 128
  %v363 = vpop.trf.xlu0
  %v364 = vpop.trf.xlu0
  %v365 = vpop.trf.xlu0
  %v366 = vpop.trf.xlu0
  %v367 = vpop.trf.xlu0
  %v368 = vpop.trf.xlu0
  %v369 = vpop.trf.xlu0
  %v370 = vpop.trf.xlu0
  %v371 = vpop.trf.xlu0
  %v372 = vpop.trf.xlu0
  %v373 = vpop.trf.xlu0
  %v374 = vpop.trf.xlu0
  %v375 = vpop.trf.xlu0
  %v376 = vpop.trf.xlu0
  %v377 = vpop.trf.xlu0
  %v378 = vpop.trf.xlu0
  %379 = vst [vmem:[%s5] sm:$0x1] %v363
  // Predicated region
  $region22: #{importance_predictor.1} parent=0 // pred_check
    _
  $region23: #{importance_predictor.1} parent=0 // pred_check_branch
    %381 = sbr.rel (0) target = $region25
  $region24: #{importance_predictor.1} parent=0 // pred_region
    _
  $region25: #{importance_predictor.1} parent=0 // pred_fallthru
    _
  // Predicated region
  $region26: #{importance_predictor.1} parent=0 // pred_check
    _
  $region27: #{importance_predictor.1} parent=0 // pred_check_branch
    %383 = sbr.rel (0) target = $region29
  $region28: #{importance_predictor.1} parent=0 // pred_region
    _
  $region29: #{importance_predictor.1} parent=0 // pred_fallthru
    _

</llo_original>
